<compile_context>
chip_gen: v5e
topology: v5e:2x2
jax: 0.10.0
libtpu: 0.0.40
codegen_flags: <defaults>
</compile_context>

<pallas_src>
import functools

import jax
import jax.numpy as jnp
from jax import lax
from jax.experimental import pallas as pl
from jax.experimental.pallas import tpu as pltpu

# Finite "minus infinity".  Kept as a *Python* float so it becomes a jaxpr
# literal (fixes the captured-constant compile error).  Do NOT change to
# -inf: exp(_NEG - _NEG) must stay finite in the online logsumexp update for
# fully-masked boundary tiles.
_NEG = -1.0e30


def _round_up(x, m):
    return ((x + m - 1) // m) * m


def _ntxent_kernel(q_ref, k_ref, o_ref, m_sc, l_sc, pos_sc, *,
                   tile, n_valid, n_pad, half_tiles, resident_k):
    ri = pl.program_id(0)                 # row (query) tile
    kj = pl.program_id(1)                 # key tile (reduction axis)
    num_key_tiles = 2 * half_tiles
    has_pad = (n_pad != n_valid)          # static Python bool

    @pl.when(kj == 0)
    def _init():
        m_sc[...] = jnp.full_like(m_sc, _NEG)
        l_sc[...] = jnp.zeros_like(l_sc)
        pos_sc[...] = jnp.zeros_like(pos_sc)

    # Logits tile: rows already carry 1/(||r|| * sqrt(T)), so q @ k^T IS the
    # logits block.  NT-form contraction (dim 1 of both operands), same as the
    # reference flash kernels -- no explicit transpose buffer is materialized.
    if resident_k:
        # whole key set lives in VMEM; slice the current (tile, d) key block
        row0 = pl.multiple_of(kj * tile, tile)
        k_tile = k_ref[pl.ds(row0, tile), :]
    else:
        k_tile = k_ref[...]
    s = lax.dot_general(q_ref[...], k_tile,
                        (((1,), (1,)), ((), ())),
                        preferred_element_type=jnp.float32)    # (tile, tile)

    # --- positive logit: lives on the local diagonal of key tile `kpos` ----
    kpos = jnp.where(ri < half_tiles, ri + half_tiles, ri - half_tiles)

    @pl.when(kj == kpos)
    def _pos():
        li = lax.broadcasted_iota(jnp.int32, (tile, 1), 0)
        lj = lax.broadcasted_iota(jnp.int32, (1, tile), 1)
        pos_sc[...] += jnp.sum(jnp.where(li == lj, s, 0.0),
                               axis=-1, keepdims=True)

    # --- online logsumexp over all keys j != i ------------------------------
    def _online_update(logits):
        m_prev = m_sc[...]
        m_new = jnp.maximum(m_prev, jnp.max(logits, axis=-1, keepdims=True))
        alpha = jnp.exp(m_prev - m_new)
        l_sc[...] = alpha * l_sc[...] + jnp.sum(jnp.exp(logits - m_new),
                                                axis=-1, keepdims=True)
        m_sc[...] = m_new

    # Masking (self diagonal, padded key columns) is only needed on
    # O(num_tiles) of the num_tiles**2 grid steps; gate all iota / select
    # work behind pl.when so the common step is pure matmul + logsumexp.
    is_diag = ri == kj
    if has_pad:
        boundary = jnp.logical_or(kj == half_tiles - 1,
                                  kj == num_key_tiles - 1)
        needs_mask = jnp.logical_or(is_diag, boundary)
    else:
        needs_mask = is_diag

    @pl.when(needs_mask)
    def _masked_update():
        li = lax.broadcasted_iota(jnp.int32, (tile, 1), 0)
        lj = lax.broadcasted_iota(jnp.int32, (1, tile), 1)   # lane iota
        masked = jnp.where(jnp.logical_and(is_diag, li == lj), _NEG, s)
        if has_pad:
            col = kj * tile + lj                             # (1, tile)
            col_in_half = jnp.where(col >= n_pad, col - n_pad, col)
            masked = jnp.where(col_in_half >= n_valid, _NEG, masked)
        _online_update(masked)

    @pl.when(jnp.logical_not(needs_mask))
    def _plain_update():
        _online_update(s)

    @pl.when(kj == num_key_tiles - 1)
    def _finalize():
        lse = m_sc[...] + jnp.log(l_sc[...])                 # (tile, 1)
        contrib = lse - pos_sc[...]
        if has_pad:
            r_loc = lax.broadcasted_iota(jnp.int32, (tile, 1), 0)
            r_glob = ri * tile + r_loc
            r_in_half = jnp.where(r_glob >= n_pad, r_glob - n_pad, r_glob)
            contrib = jnp.where(r_in_half < n_valid, contrib, 0.0)
        partial = jnp.sum(contrib)                           # scalar f32
        # lane-dense (unmasked) store of this row tile's partial loss
        o_ref[...] = jnp.broadcast_to(partial, (1, 8, 128))


def ntxent_loss(zis, zjs, *, temperature=0.5, use_cosine_similarity=True,
                tile=256, compute_dtype=None):
    """NT-Xent loss matching the PyTorch NTXentLoss forward.

    zis, zjs: (batch, dim).  Returns the scalar f32 loss.
    compute_dtype: dtype fed to the MXU (default: input dtype; bf16 halves
    HBM traffic and ~doubles MXU throughput; logsumexp math stays f32).
    """
    assert zis.shape == zjs.shape and zis.ndim == 2
    n, d = zis.shape
    assert n >= 1
    dtype = (jnp.dtype(compute_dtype) if compute_dtype is not None
             else jnp.dtype(zis.dtype))
    itemsize = dtype.itemsize

    # --- tile selection -----------------------------------------------------
    # sublane granularity: 8 rows for 4-byte dtypes, 16 for 2-byte (bf16)
    sub = 16 if itemsize == 2 else 8
    t_req = _round_up(max(int(tile), sub), sub)
    t = min(t_req, _round_up(n, sub))
    # Bound padding waste: shrink the tile while round_up(n, t) would pad the
    # half batch by more than ~12.5% (large tiles are only a win if the extra
    # MXU/EUP work isn't spent on padded rows/columns).
    while t > sub and (_round_up(n, t) - n) * 8 > n:
        t = max(sub, _round_up(t // 2, sub))
    n_pad = _round_up(n, t)          # each half padded to a tile multiple
    half_tiles = n_pad // t
    num_tiles = 2 * half_tiles       # row tiles == key tiles; always >= 2, so
                                     # the "parallel" row axis feeds both v7x TCs

    # ---- plain-JAX prologue (single fused O(2N*D) pass): pad halves,
    # concat([zjs, zis]) in torch order, fold row norms + 1/sqrt(T) into the
    # rows, cast to the MXU input dtype. ----
    zjs_p = jnp.pad(zjs.astype(jnp.float32), ((0, n_pad - n), (0, 0)))
    zis_p = jnp.pad(zis.astype(jnp.float32), ((0, n_pad - n), (0, 0)))
    reps = jnp.concatenate([zjs_p, zis_p], axis=0)           # (2*n_pad, d)

    inv_sqrt_t = 1.0 / (float(temperature) ** 0.5)
    if use_cosine_similarity:
        # per-row eps clamp (numerically equivalent to torch's pairwise
        # max(||a||*||b||, 1e-8) for any real embedding)
        sq = jnp.sum(reps * reps, axis=-1, keepdims=True)
        scale = lax.rsqrt(jnp.maximum(sq, 1e-16)) * inv_sqrt_t
    else:
        scale = jnp.float32(inv_sqrt_t)
    reps_scaled = (reps * scale).astype(dtype)               # (2*n_pad, d)

    # --- VMEM budgeting: keep the whole key set resident when it fits -------
    k_bytes = 2 * n_pad * d * itemsize
    q_block_bytes = t * d * itemsize
    small = 2 * 8 * 128 * 4 + 3 * t * 128 * 4 + (1 << 20)   # out blocks + scratch
    resident_budget = 40 << 20        # conservative: fits v7x's 64 MiB physical
    resident_k = (2 * k_bytes + 2 * q_block_bytes + small) <= resident_budget

    if resident_k:
        # full-array block, constant index_map -> DMA'd from HBM exactly once
        k_spec = pl.BlockSpec((2 * n_pad, d), lambda ri, kj: (0, 0))
        vmem_need = 2 * k_bytes + 2 * q_block_bytes + small
    else:
        # stream (t, d) key tiles; 3-deep pipeline hides the per-kj fetch
        # (matters most on v5e's ~0.8 TB/s HBM).
        k_spec = pl.BlockSpec((t, d), lambda ri, kj: (kj, 0),
                              pipeline_mode=pl.Buffered(3))
        vmem_need = 3 * q_block_bytes + 2 * q_block_bytes + small
    vmem_limit = int(min(max(vmem_need + (4 << 20), 16 << 20), 100 << 20))

    # TODO(synk): for very large d (>= ~2048 in f32) on v7x, add a contraction
    # grid axis with an f32 accumulator instead of full-d (t, d) blocks.

    kernel = functools.partial(_ntxent_kernel, tile=t, n_valid=n,
                               n_pad=n_pad, half_tiles=half_tiles,
                               resident_k=resident_k)

    partials = pl.pallas_call(
        kernel,
        out_shape=jax.ShapeDtypeStruct((num_tiles, 8, 128), jnp.float32),
        grid_spec=pltpu.PrefetchScalarGridSpec(
            num_scalar_prefetch=0,
            grid=(num_tiles, num_tiles),             # (row tiles, key tiles)
            in_specs=[
                pl.BlockSpec((t, d), lambda ri, kj: (ri, 0)),   # query rows
                k_spec,                                          # keys
            ],
            out_specs=pl.BlockSpec((1, 8, 128), lambda ri, kj: (ri, 0, 0)),
            scratch_shapes=[
                pltpu.VMEM((t, 1), jnp.float32),     # running max   m
                pltpu.VMEM((t, 1), jnp.float32),     # running sum   l
                pltpu.VMEM((t, 1), jnp.float32),     # positive logit
            ],
        ),
        compiler_params=pltpu.CompilerParams(
            dimension_semantics=("parallel", "arbitrary"),
            vmem_limit_bytes=vmem_limit,
        ),
    )(reps_scaled, reps_scaled)

    return jnp.sum(partials[:, 0, 0]) / jnp.float32(2 * n)


def _reference_loss(zis, zjs, temperature, use_cosine):
    # pure-JAX reference mirroring the PyTorch forward
    n = zis.shape[0]
    reps = jnp.concatenate([zjs, zis], axis=0).astype(jnp.float32)
    if use_cosine:
        norms = jnp.linalg.norm(reps, axis=-1, keepdims=True)
        sim = (reps @ reps.T) / jnp.maximum(norms * norms.T, 1e-8)
    else:
        sim = reps @ reps.T
    n2 = 2 * n
    idx = jnp.arange(n2)
    pos_idx = jnp.where(idx < n, idx + n, idx - n)
    logits = sim / temperature
    masked = jnp.where(jnp.eye(n2, dtype=bool), -jnp.inf, logits)
    lse = jax.scipy.special.logsumexp(masked, axis=-1)
    pos = logits[idx, pos_idx]
    return jnp.sum(lse - pos) / n2


if __name__ == "__main__":
    key = jax.random.PRNGKey(0)
    k1, k2, k3, k4 = jax.random.split(key, 4)

    # 1) small cosine-similarity case, f32
    zis = jax.random.normal(k1, (8, 32), dtype=jnp.float32)
    zjs = jax.random.normal(k2, (8, 32), dtype=jnp.float32)
    out = jax.block_until_ready(
        ntxent_loss(zis, zjs, temperature=0.5, use_cosine_similarity=True))
    ref = _reference_loss(zis, zjs, 0.5, True)
    assert jnp.allclose(out, ref, rtol=1e-4, atol=1e-4), (out, ref)

    # 2) dot-product similarity path
    out2 = jax.block_until_ready(
        ntxent_loss(zis, zjs, temperature=0.5, use_cosine_similarity=False))
    ref2 = _reference_loss(zis, zjs, 0.5, False)
    assert jnp.allclose(out2, ref2, rtol=1e-4, atol=1e-3), (out2, ref2)

    # 3) batch not a multiple of the tile -> exercises row/col padding masks
    zis3 = jax.random.normal(k3, (12, 32), dtype=jnp.float32)
    zjs3 = jax.random.normal(k4, (12, 32), dtype=jnp.float32)
    out3 = jax.block_until_ready(
        ntxent_loss(zis3, zjs3, temperature=0.2, use_cosine_similarity=True,
                    tile=8))
    ref3 = _reference_loss(zis3, zjs3, 0.2, True)
    assert jnp.allclose(out3, ref3, rtol=1e-4, atol=1e-4), (out3, ref3)

    # 4) bf16 inputs feeding the MXU in bf16 (f32 accumulation/logsumexp)
    zis_bf = zis.astype(jnp.bfloat16)
    zjs_bf = zjs.astype(jnp.bfloat16)
    out4 = jax.block_until_ready(
        ntxent_loss(zis_bf, zjs_bf, temperature=0.5,
                    use_cosine_similarity=True))
    ref4 = _reference_loss(zis_bf.astype(jnp.float32),
                           zjs_bf.astype(jnp.float32), 0.5, True)
    assert jnp.allclose(out4, ref4, rtol=5e-2, atol=5e-2), (out4, ref4)

    print("KERNEL_OK")
</pallas_src>

<mosaic_0001>
module attributes {stable_mosaic.version = 11 : i64} {
  func.func @_ntxent_kernel(%arg0: i32, %arg1: i32, %arg2: memref<8x32xf32, #tpu.memory_space<vmem>>, %arg3: memref<16x32xf32, #tpu.memory_space<vmem>>, %arg4: memref<1x8x128xf32, #tpu.memory_space<vmem>>, %arg5: memref<8x1xf32, #tpu.memory_space<vmem>>, %arg6: memref<8x1xf32, #tpu.memory_space<vmem>>, %arg7: memref<8x1xf32, #tpu.memory_space<vmem>>) attributes {dimension_semantics = [#tpu.dimension_semantics<parallel>, #tpu.dimension_semantics<arbitrary>], iteration_bounds = array<i64: 2, 2>, scalar_prefetch = 0 : i64, scratch_operands = 3 : i64, tpu.core_type = #tpu.core_type<tc>, window_params = [{transform_indices = @transform_0, window_bounds = array<i64: 8, 32>}, {pipeline_mode = #tpu.pipeline_mode<synchronous>, transform_indices = @transform_1, window_bounds = array<i64: 16, 32>}, {transform_indices = @transform_2, window_bounds = array<i64: 1, 8, 128>}]} {
    %c0_i32 = arith.constant 0 : i32
    %0 = arith.cmpi eq, %arg1, %c0_i32 : i32
    %1 = arith.extui %0 : i1 to i32
    %c0_i32_0 = arith.constant 0 : i32
    %2 = arith.cmpi ne, %1, %c0_i32_0 : i32
    scf.if %2 {
      %cst_10 = arith.constant -1.000000e+30 : f32
      %25 = vector.broadcast %cst_10 : f32 to vector<8x1xf32>
      %c0_11 = arith.constant 0 : index
      %c0_12 = arith.constant 0 : index
      %26 = vector.load %arg5[%c0_11, %c0_12] : memref<8x1xf32, #tpu.memory_space<vmem>>, vector<8x1xf32>
      tpu.vector_store %arg5[%c0_11, %c0_12], %25 {strides = array<i32>} : memref<8x1xf32, #tpu.memory_space<vmem>>, vector<8x1xf32>,
      %cst_13 = arith.constant 0.000000e+00 : f32
      %27 = vector.broadcast %cst_13 : f32 to vector<8x1xf32>
      %c0_14 = arith.constant 0 : index
      %c0_15 = arith.constant 0 : index
      %28 = vector.load %arg6[%c0_14, %c0_15] : memref<8x1xf32, #tpu.memory_space<vmem>>, vector<8x1xf32>
      tpu.vector_store %arg6[%c0_14, %c0_15], %27 {strides = array<i32>} : memref<8x1xf32, #tpu.memory_space<vmem>>, vector<8x1xf32>,
      %cst_16 = arith.constant 0.000000e+00 : f32
      %29 = vector.broadcast %cst_16 : f32 to vector<8x1xf32>
      %c0_17 = arith.constant 0 : index
      %c0_18 = arith.constant 0 : index
      %30 = vector.load %arg7[%c0_17, %c0_18] : memref<8x1xf32, #tpu.memory_space<vmem>>, vector<8x1xf32>
      tpu.vector_store %arg7[%c0_17, %c0_18], %29 {strides = array<i32>} : memref<8x1xf32, #tpu.memory_space<vmem>>, vector<8x1xf32>,
    } else {
    }
    %c8_i32 = arith.constant 8 : i32
    %3 = arith.muli %arg1, %c8_i32 : i32
    %4 = tpu.assume_multiple %3, 8 : i32
    %5 = arith.index_cast %4 : i32 to index
    %c0 = arith.constant 0 : index
    %6 = vector.load %arg3[%5, %c0] : memref<16x32xf32, #tpu.memory_space<vmem>>, vector<8x32xf32>
    %c0_1 = arith.constant 0 : index
    %c0_2 = arith.constant 0 : index
    %7 = vector.load %arg2[%c0_1, %c0_2] : memref<8x32xf32, #tpu.memory_space<vmem>>, vector<8x32xf32>
    %cst = arith.constant dense<0.000000e+00> : vector<8x8xf32>
    %8 = tpu.matmul %7, %6, %cst {dimension_numbers = #tpu.dot_dimension_numbers<[1], [1], [0], [0], [0, 0, 1, 0], [], []>} : vector<8x32xf32>, vector<8x32xf32>, vector<8x8xf32> -> vector<8x8xf32>
    %c1_i32 = arith.constant 1 : i32
    %9 = arith.cmpi slt, %arg0, %c1_i32 : i32
    %c1_i32_3 = arith.constant 1 : i32
    %10 = arith.addi %arg0, %c1_i32_3 : i32
    %c1_i32_4 = arith.constant 1 : i32
    %11 = arith.subi %arg0, %c1_i32_4 : i32
    %12 = arith.select %9, %10, %11 : i32
    %13 = arith.cmpi eq, %arg1, %12 : i32
    %14 = arith.extui %13 : i1 to i32
    %c0_i32_5 = arith.constant 0 : i32
    %15 = arith.cmpi ne, %14, %c0_i32_5 : i32
    scf.if %15 {
      %25 = tpu.iota {dimensions = array<i32: 0>} : vector<8x1xi32>
      %26 = tpu.iota {dimensions = array<i32: 1>} : vector<1x8xi32>
      %c0_10 = arith.constant 0 : index
      %c0_11 = arith.constant 0 : index
      %27 = vector.load %arg7[%c0_10, %c0_11] : memref<8x1xf32, #tpu.memory_space<vmem>>, vector<8x1xf32>
      %28 = vector.broadcast %25 : vector<8x1xi32> to vector<8x8xi32>
      %29 = vector.broadcast %26 : vector<1x8xi32> to vector<8x8xi32>
      %30 = arith.cmpi eq, %28, %29 : vector<8x8xi32>
      %cst_12 = arith.constant 0.000000e+00 : f32
      %31 = vector.broadcast %cst_12 : f32 to vector<8x8xf32>
      %32 = arith.select %30, %8, %31 : vector<8x8xi1>, vector<8x8xf32>
      %cst_13 = arith.constant dense<0.000000e+00> : vector<8xf32>
      %33 = vector.multi_reduction <add>, %32, %cst_13 [1] : vector<8x8xf32> to vector<8xf32>
      %34 = vector.shape_cast %33 : vector<8xf32> to vector<8x1xf32>
      %35 = arith.addf %27, %34 : vector<8x1xf32>
      %c0_14 = arith.constant 0 : index
      %c0_15 = arith.constant 0 : index
      %36 = vector.load %arg7[%c0_14, %c0_15] : memref<8x1xf32, #tpu.memory_space<vmem>>, vector<8x1xf32>
      tpu.vector_store %arg7[%c0_14, %c0_15], %35 {strides = array<i32>} : memref<8x1xf32, #tpu.memory_space<vmem>>, vector<8x1xf32>,
    } else {
    }
    %16 = arith.cmpi eq, %arg0, %arg1 : i32
    %17 = arith.extui %16 : i1 to i32
    %c0_i32_6 = arith.constant 0 : i32
    %18 = arith.cmpi ne, %17, %c0_i32_6 : i32
    scf.if %18 {
      %25 = tpu.iota {dimensions = array<i32: 0>} : vector<8x1xi32>
      %26 = tpu.iota {dimensions = array<i32: 1>} : vector<1x8xi32>
      %27 = vector.broadcast %25 : vector<8x1xi32> to vector<8x8xi32>
      %28 = vector.broadcast %26 : vector<1x8xi32> to vector<8x8xi32>
      %29 = arith.cmpi eq, %27, %28 : vector<8x8xi32>
      %30 = vector.broadcast %16 : i1 to vector<8x8xi1>
      %31 = arith.andi %30, %29 : vector<8x8xi1>
      %cst_10 = arith.constant -1.000000e+30 : f32
      %32 = vector.broadcast %cst_10 : f32 to vector<8x8xf32>
      %33 = arith.select %31, %32, %8 : vector<8x8xi1>, vector<8x8xf32>
      %c0_11 = arith.constant 0 : index
      %c0_12 = arith.constant 0 : index
      %34 = vector.load %arg5[%c0_11, %c0_12] : memref<8x1xf32, #tpu.memory_space<vmem>>, vector<8x1xf32>
      %cst_13 = arith.constant dense<0xFF800000> : vector<8xf32>
      %35 = vector.multi_reduction <maximumf>, %33, %cst_13 [1] : vector<8x8xf32> to vector<8xf32>
      %36 = vector.shape_cast %35 : vector<8xf32> to vector<8x1xf32>
      %37 = arith.maximumf %34, %36 : vector<8x1xf32>
      %38 = arith.subf %34, %37 : vector<8x1xf32>
      %39 = math.exp %38 : vector<8x1xf32>
      %c0_14 = arith.constant 0 : index
      %c0_15 = arith.constant 0 : index
      %40 = vector.load %arg6[%c0_14, %c0_15] : memref<8x1xf32, #tpu.memory_space<vmem>>, vector<8x1xf32>
      %41 = arith.mulf %39, %40 : vector<8x1xf32>
      %42 = vector.broadcast %37 : vector<8x1xf32> to vector<8x8xf32>
      %43 = arith.subf %33, %42 : vector<8x8xf32>
      %44 = math.exp %43 : vector<8x8xf32>
      %cst_16 = arith.constant dense<0.000000e+00> : vector<8xf32>
      %45 = vector.multi_reduction <add>, %44, %cst_16 [1] : vector<8x8xf32> to vector<8xf32>
      %46 = vector.shape_cast %45 : vector<8xf32> to vector<8x1xf32>
      %47 = arith.addf %41, %46 : vector<8x1xf32>
      %c0_17 = arith.constant 0 : index
      %c0_18 = arith.constant 0 : index
      %48 = vector.load %arg6[%c0_17, %c0_18] : memref<8x1xf32, #tpu.memory_space<vmem>>, vector<8x1xf32>
      tpu.vector_store %arg6[%c0_17, %c0_18], %47 {strides = array<i32>} : memref<8x1xf32, #tpu.memory_space<vmem>>, vector<8x1xf32>,
      %c0_19 = arith.constant 0 : index
      %c0_20 = arith.constant 0 : index
      %49 = vector.load %arg5[%c0_19, %c0_20] : memref<8x1xf32, #tpu.memory_space<vmem>>, vector<8x1xf32>
      tpu.vector_store %arg5[%c0_19, %c0_20], %37 {strides = array<i32>} : memref<8x1xf32, #tpu.memory_space<vmem>>, vector<8x1xf32>,
    } else {
    }
    %true = arith.constant true
    %19 = arith.xori %16, %true : i1
    %20 = arith.extui %19 : i1 to i32
    %c0_i32_7 = arith.constant 0 : i32
    %21 = arith.cmpi ne, %20, %c0_i32_7 : i32
    scf.if %21 {
      %c0_10 = arith.constant 0 : index
      %c0_11 = arith.constant 0 : index
      %25 = vector.load %arg5[%c0_10, %c0_11] : memref<8x1xf32, #tpu.memory_space<vmem>>, vector<8x1xf32>
      %cst_12 = arith.constant dense<0xFF800000> : vector<8xf32>
      %26 = vector.multi_reduction <maximumf>, %8, %cst_12 [1] : vector<8x8xf32> to vector<8xf32>
      %27 = vector.shape_cast %26 : vector<8xf32> to vector<8x1xf32>
      %28 = arith.maximumf %25, %27 : vector<8x1xf32>
      %29 = arith.subf %25, %28 : vector<8x1xf32>
      %30 = math.exp %29 : vector<8x1xf32>
      %c0_13 = arith.constant 0 : index
      %c0_14 = arith.constant 0 : index
      %31 = vector.load %arg6[%c0_13, %c0_14] : memref<8x1xf32, #tpu.memory_space<vmem>>, vector<8x1xf32>
      %32 = arith.mulf %30, %31 : vector<8x1xf32>
      %33 = vector.broadcast %28 : vector<8x1xf32> to vector<8x8xf32>
      %34 = arith.subf %8, %33 : vector<8x8xf32>
      %35 = math.exp %34 : vector<8x8xf32>
      %cst_15 = arith.constant dense<0.000000e+00> : vector<8xf32>
      %36 = vector.multi_reduction <add>, %35, %cst_15 [1] : vector<8x8xf32> to vector<8xf32>
      %37 = vector.shape_cast %36 : vector<8xf32> to vector<8x1xf32>
      %38 = arith.addf %32, %37 : vector<8x1xf32>
      %c0_16 = arith.constant 0 : index
      %c0_17 = arith.constant 0 : index
      %39 = vector.load %arg6[%c0_16, %c0_17] : memref<8x1xf32, #tpu.memory_space<vmem>>, vector<8x1xf32>
      tpu.vector_store %arg6[%c0_16, %c0_17], %38 {strides = array<i32>} : memref<8x1xf32, #tpu.memory_space<vmem>>, vector<8x1xf32>,
      %c0_18 = arith.constant 0 : index
      %c0_19 = arith.constant 0 : index
      %40 = vector.load %arg5[%c0_18, %c0_19] : memref<8x1xf32, #tpu.memory_space<vmem>>, vector<8x1xf32>
      tpu.vector_store %arg5[%c0_18, %c0_19], %28 {strides = array<i32>} : memref<8x1xf32, #tpu.memory_space<vmem>>, vector<8x1xf32>,
    } else {
    }
    %c1_i32_8 = arith.constant 1 : i32
    %22 = arith.cmpi eq, %arg1, %c1_i32_8 : i32
    %23 = arith.extui %22 : i1 to i32
    %c0_i32_9 = arith.constant 0 : i32
    %24 = arith.cmpi ne, %23, %c0_i32_9 : i32
    scf.if %24 {
      %c0_10 = arith.constant 0 : index
      %c0_11 = arith.constant 0 : index
      %25 = vector.load %arg5[%c0_10, %c0_11] : memref<8x1xf32, #tpu.memory_space<vmem>>, vector<8x1xf32>
      %c0_12 = arith.constant 0 : index
      %c0_13 = arith.constant 0 : index
      %26 = vector.load %arg6[%c0_12, %c0_13] : memref<8x1xf32, #tpu.memory_space<vmem>>, vector<8x1xf32>
      %27 = math.log %26 : vector<8x1xf32>
      %28 = arith.addf %25, %27 : vector<8x1xf32>
      %c0_14 = arith.constant 0 : index
      %c0_15 = arith.constant 0 : index
      %29 = vector.load %arg7[%c0_14, %c0_15] : memref<8x1xf32, #tpu.memory_space<vmem>>, vector<8x1xf32>
      %30 = arith.subf %28, %29 : vector<8x1xf32>
      %31 = vector.shape_cast %30 : vector<8x1xf32> to vector<1x8x1xf32>
      %cst_16 = arith.constant dense<0.000000e+00> : vector<1xf32>
      %32 = vector.multi_reduction <add>, %31, %cst_16 [1, 2] : vector<1x8x1xf32> to vector<1xf32>
      %33 = vector.shape_cast %32 : vector<1xf32> to vector<1x1x1xf32>
      %34 = vector.extract %33[0, 0, 0] : f32 from vector<1x1x1xf32>
      %35 = vector.broadcast %34 : f32 to vector<1x8x128xf32>
      %c0_17 = arith.constant 0 : index
      %c0_18 = arith.constant 0 : index
      %c0_19 = arith.constant 0 : index
      %36 = vector.load %arg4[%c0_17, %c0_18, %c0_19] : memref<1x8x128xf32, #tpu.memory_space<vmem>>, vector<1x8x128xf32>
      tpu.vector_store %arg4[%c0_17, %c0_18, %c0_19], %35 {strides = array<i32>} : memref<1x8x128xf32, #tpu.memory_space<vmem>>, vector<1x8x128xf32>,
    } else {
    }
    return
  }
  func.func @transform_0(%arg0: i32, %arg1: i32) -> (i32, i32) {
    %c0_i32 = arith.constant 0 : i32
    %c0_i32_0 = arith.constant 0 : i32
    return %arg0, %c0_i32 : i32, i32
  }
  func.func @transform_1(%arg0: i32, %arg1: i32) -> (i32, i32) {
    %c0_i32 = arith.constant 0 : i32
    %c0_i32_0 = arith.constant 0 : i32
    %c0_i32_1 = arith.constant 0 : i32
    return %c0_i32, %c0_i32_0 : i32, i32
  }
  func.func @transform_2(%arg0: i32, %arg1: i32) -> (i32, i32, i32) {
    %c0_i32 = arith.constant 0 : i32
    %c0_i32_0 = arith.constant 0 : i32
    %c0_i32_1 = arith.constant 0 : i32
    return %arg0, %c0_i32, %c0_i32_0 : i32, i32, i32
  }
}

</mosaic_0001>

<llo_original>
// kernel: tpu_custom_call.1
$region0: #{tpu_custom_call.1}
  #allocation0 [shape = 'u32[]', space=smem, size = 0x4, offset = 0x4, fixed_abs, tag = 'smem constant byte address 0x4 - core index']
  #allocation1 [shape = 'u32[72,128]{1,0:T(1,128)}', space=vmem, size = 0x9000, scoped, tag = 'internal scratch']
  #allocation2 [shape = 'f32[8,1]{1,0:T(8,128)}', space=vmem, size = 0x1000, scoped, tag = 'scratch operand']
  #allocation3 [shape = 'f32[8,1]{1,0:T(8,128)}', space=vmem, size = 0x1000, scoped, tag = 'scratch operand']
  #allocation4 [shape = 'f32[8,1]{1,0:T(8,128)}', space=vmem, size = 0x1000, scoped, tag = 'scratch operand']
  %s0 = inlined_call_operand.hbm [shape: f32[16,32], index: 0, kind: input, shape index: {}]
  %s1 = inlined_call_operand.hbm [shape: f32[16,32], index: 1, kind: input, shape index: {}]
  %s2 = inlined_call_operand.hbm [shape: f32[2,8,128], index: 2, kind: output, shape index: {}]
  %s3 = sld [smem:[#allocation0]]
  $region69: #{tpu_custom_call.1} parent=0
    _
  %s5 = ssub.s32 1, %s3
  %s6 = scalar_select 0, %s5, %s3
  $region1: #{tpu_custom_call.1} parent=0
    #allocation5 [shape = 'u8[8192]{0}', space=vmem, size = 0x2000, scoped, tag = 'input window, operand 0']
    #allocation6 [shape = 's32[2]{0}', space=sflag, size = 0x8, scoped, tag = 'scoped memory for tpu_custom_call.1']
    #allocation7 [shape = 's32[2]{0}', space=sflag, size = 0x8, scoped, tag = 'scoped memory for tpu_custom_call.1']
    #allocation8 [shape = 'u8[8192]{0}', space=vmem, size = 0x2000, scoped, tag = 'input window, operand 1, single buffered']
    #allocation9 [shape = 's32[1]{0}', space=sflag, size = 0x4, scoped, tag = 'scoped memory for tpu_custom_call.1']
    #allocation10 [shape = 'u8[8192]{0}', space=vmem, size = 0x2000, scoped, tag = 'output window, operand 0']
    %7 = vsyncpa [#allocation6], 0
    %s8 = scalar_lea.sflag [#allocation6], 1
    %9 = vsyncpa %s8, 0
    %10 = vsyncpa [#allocation9], 0
    %11 = vsyncpa [#allocation7], 0
    %s12 = scalar_lea.sflag [#allocation7], 1
    %13 = vsyncpa %s12, 0
    loop: start=0, step=1, limit=6
    $region2: #{tpu_custom_call.1} parent=1 // loop_pre_header
      _
    $region3: #{tpu_custom_call.1} parent=1 // loop_header
      %s15 = sphi 0, %s19
      %p16 = scmp.ge.s32.totalorder %s15, 6
      %s22 = sphi 0, %s34
      %s23 = sphi 0, %s30
      %s24 = sphi 0, %s22
      %s25 = sphi 0, %s23
      %s26 = sphi 0, %s24
      %s27 = sphi 0, %s25
      %s37 = sphi 0, %s39
      %s40 = sphi 0, %s37
      %s41 = sphi 0, %s40
      %s57 = sphi 0, %s41
      %s61 = sphi 0, %s61
      %s63 = sphi 0, %s61
      %s64 = sphi 0, %s63
      %s78 = sphi 0, %s64
      %s84 = sphi 0, %s86
      %s87 = sphi 0, %s84
      %s88 = sphi 0, %s87
      %s104 = sphi 0, %s88
    $region4: #{tpu_custom_call.1} parent=1 // loop_header_branch
      %18 = sbr.rel (%p16) target = $region8
    $region5: #{tpu_custom_call.1} parent=1 // loop_body
      %s20 = ssub.s32 %s15, 1
      %s21 = ssub.s32 %s15, 2
      %s28 = sadd.s32 1, %s23
      %p29 = scmp.ge.s32.totalorder %s28, 2
      %s30 = scalar_select %p29, 0, %s28
      %s31 = sadd.s32 1, %s22
      %s32 = scalar_select %p29, %s31, %s22
      %p33 = scmp.ge.s32.totalorder %s32, 2
      %s34 = scalar_select %p33, 0, %s32
      %s35 = ssub.s32 %s22, %s34
      %p36 = scmp.eq.s32.totalorder %s35, 0
      %s38 = sadd.s32 %s37, 1
      %s39 = scalar_select %p36, %s37, %s38
      %p42 = pneg %p36
      %p43 = scmp.eq.s32.totalorder %s15, 3
      %p44 = por %p42, %p43
      %p45 = scmp.ne.s32.totalorder %s37, %s40
      %p46 = scmp.eq.s32.totalorder %s15, 0
      %p47 = por %p45, %p46
      %p48 = scmp.ne.s32.totalorder %s37, %s40
      %p49 = scmp.eq.s32.totalorder %s20, 3
      %p50 = por %p48, %p49
      %p51 = scmp.ne.s32.totalorder %s40, %s41
      %p52 = scmp.eq.s32.totalorder %s20, 0
      %p53 = por %p51, %p52
      %p54 = scmp.ne.s32.totalorder %s40, %s41
      %p55 = scmp.eq.s32.totalorder %s21, 3
      %p56 = por %p54, %p55
      %p58 = scmp.ne.s32.totalorder %s41, %s57
      %p59 = scmp.eq.s32.totalorder %s21, 0
      %p60 = por %p58, %p59
      %s62 = sadd.s32 %s61, 1
      %p65 = scmp.eq.s32.totalorder %s15, 3
      %p66 = scmp.ne.s32.totalorder %s61, %s63
      %p67 = scmp.eq.s32.totalorder %s15, 0
      %p68 = por %p66, %p67
      %p69 = scmp.ne.s32.totalorder %s61, %s63
      %p70 = scmp.eq.s32.totalorder %s20, 3
      %p71 = por %p69, %p70
      %p72 = scmp.ne.s32.totalorder %s63, %s64
      %p73 = scmp.eq.s32.totalorder %s20, 0
      %p74 = por %p72, %p73
      %p75 = scmp.ne.s32.totalorder %s63, %s64
      %p76 = scmp.eq.s32.totalorder %s21, 3
      %p77 = por %p75, %p76
      %p79 = scmp.ne.s32.totalorder %s64, %s78
      %p80 = scmp.eq.s32.totalorder %s21, 0
      %p81 = por %p79, %p80
      %s82 = ssub.s32 %s22, %s34
      %p83 = scmp.eq.s32.totalorder %s82, 0
      %s85 = sadd.s32 %s84, 1
      %s86 = scalar_select %p83, %s84, %s85
      %p89 = pneg %p83
      %p90 = scmp.eq.s32.totalorder %s15, 3
      %p91 = por %p89, %p90
      %p92 = scmp.ne.s32.totalorder %s84, %s87
      %p93 = scmp.eq.s32.totalorder %s15, 0
      %p94 = por %p92, %p93
      %p95 = scmp.ne.s32.totalorder %s84, %s87
      %p96 = scmp.eq.s32.totalorder %s20, 3
      %p97 = por %p95, %p96
      %p98 = scmp.ne.s32.totalorder %s87, %s88
      %p99 = scmp.eq.s32.totalorder %s20, 0
      %p100 = por %p98, %p99
      %p101 = scmp.ne.s32.totalorder %s87, %s88
      %p102 = scmp.eq.s32.totalorder %s21, 3
      %p103 = por %p101, %p102
      %p105 = scmp.ne.s32.totalorder %s88, %s104
      %p106 = scmp.eq.s32.totalorder %s21, 0
      %p107 = por %p105, %p106
      %p108 = scmp.le.s32.totalorder 1, %s15
      %p109 = scmp.lt.s32.totalorder %s15, 5
      %p110 = pnand %p108, %p109
      %p111 = pneg %p110
      // Predicated region
      $region9: #{tpu_custom_call.1} parent=5 // pred_check
        _
      $region10: #{tpu_custom_call.1} parent=5 // pred_check_branch
        %113 = sbr.rel (%p110) target = $region12
      $region11: #{tpu_custom_call.1} parent=5 // pred_region
        %s114 = ssub.s32 %s15, 1
        // Predicated region
        $region13: #{tpu_custom_call.1} parent=11 // pred_check
          %p115 = pneg %p74
        $region14: #{tpu_custom_call.1} parent=11 // pred_check_branch
          %117 = sbr.rel (%p115) target = $region16
        $region15: #{tpu_custom_call.1} parent=11 // pred_region
          %119 = vsyncadd [#allocation9], 0
          %s120 = sshll.u32 %s1, 4
          %s121 = int_to_ptr.hbm [resolvable:$true] %s120
          %s122 = sshll.u32 [#allocation8], 4
          %s123 = int_to_ptr.vmem [resolvable:$true] %s122
          %128 = dma.hbm_to_vmem [thread:$0]  %s121, 256, %s123, [#allocation9], 128, 128, 8
        $region16: #{tpu_custom_call.1} parent=11 // pred_fallthru
          _
      $region12: #{tpu_custom_call.1} parent=5 // pred_fallthru
        _
      %p129 = scmp.lt.s32.totalorder %s15, 4
      // Predicated region
      $region17: #{tpu_custom_call.1} parent=5 // pred_check
        %p130 = pneg %p129
      $region18: #{tpu_custom_call.1} parent=5 // pred_check_branch
        %132 = sbr.rel (%p130) target = $region20
      $region19: #{tpu_custom_call.1} parent=5 // pred_region
        // Predicated region
        $region21: #{tpu_custom_call.1} parent=19 // pred_check
          %p133 = pneg %p47
        $region22: #{tpu_custom_call.1} parent=19 // pred_check_branch
          %135 = sbr.rel (%p133) target = $region24
        $region23: #{tpu_custom_call.1} parent=19 // pred_region
          %s136 = sand.u32 %s37, 1
          %s137 = scalar_lea.sflag [#allocation6], %s136
          %s138 = sand.u32 %s37, 1
          %s139 = smul.addr %s138, 8
          %s140 = scalar_lea.vmem [#allocation5], %s139
          %142 = vsyncadd %s137, 0
          %s143 = smul.addr %s22, 8
          %s144 = scalar_lea.hbm %s0, %s143
          %s146 = sshll.u32 %s144, 4
          %s147 = int_to_ptr.hbm [resolvable:$true] %s146
          %s148 = sshll.u32 %s140, 4
          %s149 = int_to_ptr.vmem [resolvable:$true] %s148
          %151 = dma.hbm_to_vmem [thread:$0]  %s147, 128, %s149, %s137
        $region24: #{tpu_custom_call.1} parent=19 // pred_fallthru
          _
      $region20: #{tpu_custom_call.1} parent=5 // pred_fallthru
        _
      %p152 = scmp.le.s32.totalorder 1, %s15
      %p153 = scmp.lt.s32.totalorder %s15, 5
      %p154 = pnand %p152, %p153
      %p155 = pneg %p154
      // Predicated region
      $region25: #{tpu_custom_call.1} parent=5 // pred_check
        _
      $region26: #{tpu_custom_call.1} parent=5 // pred_check_branch
        %157 = sbr.rel (%p154) target = $region28
      $region27: #{tpu_custom_call.1} parent=5 // pred_region
        %s158 = ssub.s32 %s15, 1
        %s159 = sand.u32 %s40, 1
        %s160 = scalar_lea.sflag [#allocation6], %s159
        %s161 = sand.u32 %s40, 1
        %s162 = smul.addr %s161, 8
        %s163 = scalar_lea.vmem [#allocation5], %s162
        // Predicated region
        $region29: #{tpu_custom_call.1} parent=27 // pred_check
          %p164 = pneg %p53
        $region30: #{tpu_custom_call.1} parent=27 // pred_check_branch
          %166 = sbr.rel (%p164) target = $region32
        $region31: #{tpu_custom_call.1} parent=27 // pred_region
          %168 = dma.done %s160, 128
        $region32: #{tpu_custom_call.1} parent=27 // pred_fallthru
          _
        // Predicated region
        $region33: #{tpu_custom_call.1} parent=27 // pred_check
          %p169 = pneg %p74
        $region34: #{tpu_custom_call.1} parent=27 // pred_check_branch
          %171 = sbr.rel (%p169) target = $region36
        $region35: #{tpu_custom_call.1} parent=27 // pred_region
          %173 = dma.done [#allocation9], 256
        $region36: #{tpu_custom_call.1} parent=27 // pred_fallthru
          _
        %s174 = sand.u32 %s40, 1
        %s175 = scalar_lea.sflag [#allocation6], %s174
        %s176 = sand.u32 %s40, 1
        %s177 = smul.addr %s176, 8
        %s178 = scalar_lea.vmem [#allocation5], %s177
        %p179 = pneg %p53
        %p180 = pneg %p50
        %p181 = pneg %p74
        %p182 = pneg %p71
        %p183 = pneg %p100
        %p184 = pneg %p97
        %s185 = sand.u32 %s87, 1
        %s186 = scalar_lea.sflag [#allocation7], %s185
        %s187 = sand.u32 %s87, 1
        %s188 = smul.addr %s187, 8
        %s189 = scalar_lea.vmem [#allocation10], %s188
        %p190 = scmp.eq.s32.totalorder %s25, 0
        // Predicated region
        $region37: #{tpu_custom_call.1} parent=27 // pred_check
          %p191 = pneg %p190
        $region38: #{tpu_custom_call.1} parent=27 // pred_check_branch
          %193 = sbr.rel (%p191) target = $region40
        $region39: #{tpu_custom_call.1} parent=27 // pred_region
          %vm194 = vcmask 7168
          %195 = vst.msk [vmem:[#allocation2] sm:$0xff] %vm194, -1e+30
          %196 = vst.msk [vmem:[#allocation3] sm:$0xff] %vm194, 0.0
          %197 = vst.msk [vmem:[#allocation4] sm:$0xff] %vm194, 0.0
        $region40: #{tpu_custom_call.1} parent=27 // pred_fallthru
          _
        %s198 = smul.u32 %s25, 8
        %s199 = scalar_lea.vmem [#allocation8], %s198
        %v200 = vld [vmem:[%s199] sm:$0xff]
        %v201 = vld [vmem:[%s163] sm:$0xff]
        %vm202 = vcmask 261120
        %v204 = vsel %vm202, %v201, 0
        %v207 = vsel %vm202, %v200, 0
        %209 = vmatpush.xpose.msra.mxu0 0.0
        %210 = vmatpush.xpose.msra.mxu0 0.0
        %211 = vmatpush.xpose.msra.mxu0 0.0
        %212 = vmatpush.xpose.msra.mxu0 0.0
        %213 = vmatpush.xpose.msra.mxu0 0.0
        %214 = vmatpush.xpose.msra.mxu0 0.0
        %215 = vmatpush.xpose.msra.mxu0 0.0
        %216 = vmatpush.xpose.msra.mxu0 0.0
        %217 = vmatpush.xpose.msra.mxu0 0.0
        %218 = vmatpush.xpose.msra.mxu0 0.0
        %219 = vmatpush.xpose.msra.mxu0 0.0
        %220 = vmatpush.xpose.msra.mxu0 0.0
        %221 = vmatpush.xpose.msra.mxu0 0.0
        %222 = vmatpush.xpose.msra.mxu0 0.0
        %223 = vmatpush.xpose.msra.mxu0 0.0
        %224 = vmatpush.xpose.msra.mxu0 %v207
        %225 = vmatmul.f32.gmra.mxu0 %v204
        %v226 = vpop.f32.mrf.mxu0
        %v227 = vadd.f32 0.0, %v226
        %228 = vdwg.mxu0
        %p229 = scmp.lt.s32.totalorder %s24, 1
        %s230 = sadd.s32 %s24, 1
        %s231 = ssub.s32 %s24, 1
        %s232 = scalar_select %p229, %s230, %s231
        %p233 = scmp.eq.s32.totalorder %s25, %s232
        // Predicated region
        $region41: #{tpu_custom_call.1} parent=27 // pred_check
          %p234 = pneg %p233
        $region42: #{tpu_custom_call.1} parent=27 // pred_check_branch
          %236 = sbr.rel (%p234) target = $region44
        $region43: #{tpu_custom_call.1} parent=27 // pred_region
          %v237 = vlaneseq
          %v238 = vshrl.u32 %v237, 7
          %v239 = vlaneseq
          %v240 = vand.u32 %v239, 127
          %v241 = vld [vmem:[#allocation4] sm:$0xff]
          %vm242 = vcmp.eq.s32.totalorder %v238, %v240
          %v243 = vsel %vm242, %v227, 0.0
          %vm244 = vcmask 64512
          %v245 = vsel %vm244, %v243, 0.0
          %246 = vadd.xlane.f32.xlu0 %v245
          %v247 = vpop.xlane.xlu0 %246
          %v248 = vadd.f32 %v241, %v247
          %vm249 = vcmask 7168
          %250 = vst.msk [vmem:[#allocation4] sm:$0xff] %vm249, %v248
        $region44: #{tpu_custom_call.1} parent=27 // pred_fallthru
          _
        %p251 = scmp.eq.s32.totalorder %s24, %s25
        // Predicated region
        $region45: #{tpu_custom_call.1} parent=27 // pred_check
          %p252 = pneg %p251
        $region46: #{tpu_custom_call.1} parent=27 // pred_check_branch
          %254 = sbr.rel (%p252) target = $region48
        $region47: #{tpu_custom_call.1} parent=27 // pred_region
          %v255 = vlaneseq
          %v256 = vshrl.u32 %v255, 7
          %v257 = vlaneseq
          %v258 = vand.u32 %v257, 127
          %vm259 = vcmp.eq.s32.totalorder %v256, %v258
          %v260 = vsel %vm259, -1e+30, %v227
          %v261 = vld [vmem:[#allocation2] sm:$0xff]
          %vm262 = vcmask 64512
          %v263 = vsel %vm262, %v260, -inf
          %264 = vmax.xlane.f32.xlu0 %v263
          %v265 = vpop.xlane.xlu0 %264
          %v266 = vmax.f32 %v261, %v265
          %v267 = vsub.f32 %v261, %v266
          %v268 = vmul.f32 %v267, 1.442695
          %v269 = vpow.pop %v268
          %v270 = vld [vmem:[#allocation3] sm:$0xff]
          %v271 = vmul.f32 %v269, %v270
          %273 = vset.pattern.permute.xlu0 0
          %274 = vperm.xlu0 %273, %v266
          %v275 = vpop.permute.xlu0 %274
          %v277 = vsub.f32 %v260, %v275
          %v278 = vmul.f32 %v277, 1.442695
          %v279 = vpow.pop %v278
          %v280 = vsel %vm262, %v279, 0.0
          %281 = vadd.xlane.f32.xlu0 %v280
          %v282 = vpop.xlane.xlu0 %281
          %v283 = vadd.f32 %v271, %v282
          %vm284 = vcmask 7168
          %285 = vst.msk [vmem:[#allocation3] sm:$0xff] %vm284, %v283
          %286 = vst.msk [vmem:[#allocation2] sm:$0xff] %vm284, %v266
        $region48: #{tpu_custom_call.1} parent=27 // pred_fallthru
          _
        %p287 = scmp.ne.s32.totalorder %s24, %s25
        // Predicated region
        $region49: #{tpu_custom_call.1} parent=27 // pred_check
          %p288 = pneg %p287
        $region50: #{tpu_custom_call.1} parent=27 // pred_check_branch
          %290 = sbr.rel (%p288) target = $region52
        $region51: #{tpu_custom_call.1} parent=27 // pred_region
          %v291 = vld [vmem:[#allocation2] sm:$0xff]
          %vm292 = vcmask 64512
          %v293 = vsel %vm292, %v227, -inf
          %294 = vmax.xlane.f32.xlu0 %v293
          %v295 = vpop.xlane.xlu0 %294
          %v296 = vmax.f32 %v291, %v295
          %v297 = vsub.f32 %v291, %v296
          %v298 = vmul.f32 %v297, 1.442695
          %v299 = vpow.pop %v298
          %v300 = vld [vmem:[#allocation3] sm:$0xff]
          %v301 = vmul.f32 %v299, %v300
          %303 = vset.pattern.permute.xlu0 0
          %304 = vperm.xlu0 %303, %v296
          %v305 = vpop.permute.xlu0 %304
          %v307 = vsub.f32 %v227, %v305
          %v308 = vmul.f32 %v307, 1.442695
          %v309 = vpow.pop %v308
          %v310 = vsel %vm292, %v309, 0.0
          %311 = vadd.xlane.f32.xlu0 %v310
          %v312 = vpop.xlane.xlu0 %311
          %v313 = vadd.f32 %v301, %v312
          %vm314 = vcmask 7168
          %315 = vst.msk [vmem:[#allocation3] sm:$0xff] %vm314, %v313
          %316 = vst.msk [vmem:[#allocation2] sm:$0xff] %vm314, %v296
        $region52: #{tpu_custom_call.1} parent=27 // pred_fallthru
          _
        %p317 = scmp.eq.s32.totalorder %s25, 1
        // Predicated region
        $region53: #{tpu_custom_call.1} parent=27 // pred_check
          %p318 = pneg %p317
        $region54: #{tpu_custom_call.1} parent=27 // pred_check_branch
          %320 = sbr.rel (%p318) target = $region56
        $region55: #{tpu_custom_call.1} parent=27 // pred_region
          %v321 = vld [vmem:[#allocation2] sm:$0xff]
          %v322 = vld [vmem:[#allocation3] sm:$0xff]
          %v323 = vlog2.pop %v322
          %v324 = vmul.f32 %v323, 0.6931472
          %v325 = vadd.f32 %v321, %v324
          %v326 = vld [vmem:[#allocation4] sm:$0xff]
          %v327 = vsub.f32 %v325, %v326
          %vm328 = vcmask 7168
          %v329 = vsel %vm328, %v327, 0.0
          %330 = vadd.xlane.f32.xlu0 %v329
          %v331 = vpop.xlane.xlu0 %330
          %v332 = vrot.slane %v331, 4
          %v333 = vadd.f32 %v331, %v332
          %v334 = vrot.slane %v333, 2
          %v335 = vadd.f32 %v333, %v334
          %v336 = vrot.slane %v335, 1
          %v337 = vadd.f32 %v335, %v336
          %s338 = vtos %v337
          %v339 = vstv %s338
          %340 = vst [vmem:[%s189] sm:$0xff] %v339
        $region56: #{tpu_custom_call.1} parent=27 // pred_fallthru
          _
        %s341 = sand.u32 %s87, 1
        %s342 = scalar_lea.sflag [#allocation7], %s341
        %s343 = sand.u32 %s87, 1
        %s344 = smul.addr %s343, 8
        %s345 = scalar_lea.vmem [#allocation10], %s344
        // Predicated region
        $region57: #{tpu_custom_call.1} parent=27 // pred_check
          %p346 = pneg %p97
        $region58: #{tpu_custom_call.1} parent=27 // pred_check_branch
          %348 = sbr.rel (%p346) target = $region60
        $region59: #{tpu_custom_call.1} parent=27 // pred_region
          %350 = vsyncadd %s342, 0
          %s351 = smul.addr %s24, 8
          %s352 = scalar_lea.hbm %s2, %s351
          %s354 = sshll.u32 %s345, 4
          %s355 = int_to_ptr.vmem [resolvable:$true] %s354
          %s356 = sshll.u32 %s352, 4
          %s357 = int_to_ptr.hbm [resolvable:$true] %s356
          %359 = dma.vmem_to_hbm [thread:$0]  %s355, 128, %s357, %s342
        $region60: #{tpu_custom_call.1} parent=27 // pred_fallthru
          _
      $region28: #{tpu_custom_call.1} parent=5 // pred_fallthru
        _
      %p360 = scmp.le.s32.totalorder 2, %s15
      // Predicated region
      $region61: #{tpu_custom_call.1} parent=5 // pred_check
        %p361 = pneg %p360
      $region62: #{tpu_custom_call.1} parent=5 // pred_check_branch
        %363 = sbr.rel (%p361) target = $region64
      $region63: #{tpu_custom_call.1} parent=5 // pred_region
        %s364 = ssub.s32 %s15, 2
        // Predicated region
        $region65: #{tpu_custom_call.1} parent=63 // pred_check
          %p365 = pneg %p103
        $region66: #{tpu_custom_call.1} parent=63 // pred_check_branch
          %367 = sbr.rel (%p365) target = $region68
        $region67: #{tpu_custom_call.1} parent=63 // pred_region
          %s368 = sand.u32 %s88, 1
          %s369 = scalar_lea.sflag [#allocation7], %s368
          %s370 = sand.u32 %s88, 1
          %s371 = smul.addr %s370, 8
          %s372 = scalar_lea.vmem [#allocation10], %s371
          %374 = dma.done %s369, 128
        $region68: #{tpu_custom_call.1} parent=63 // pred_fallthru
          _
      $region64: #{tpu_custom_call.1} parent=5 // pred_fallthru
        _
    $region6: #{tpu_custom_call.1} parent=1 // loop_footer
      %s19 = sadd.s32 1, %s15
    $region7: #{tpu_custom_call.1} parent=1 // loop_footer_branch
      %14 = sbr.rel target = $region3
    $region8: #{tpu_custom_call.1} parent=1 // loop_exit
      _
    %375 = vsyncpa [#allocation6], 1
    %s376 = scalar_lea.sflag [#allocation6], 1
    %377 = vsyncpa %s376, 1
    %378 = vsyncpa [#allocation9], 1
    %379 = vsyncpa [#allocation7], 1
    %s380 = scalar_lea.sflag [#allocation7], 1
    %381 = vsyncpa %s380, 1

</llo_original>
